<compile_context>
chip_gen: v5e
topology: v5e:2x2
jax: 0.10.0
libtpu: 0.0.40
codegen_flags: <defaults>
</compile_context>

<pallas_src>
import functools

import jax
import jax.numpy as jnp
import numpy as np
from jax.experimental import pallas as pl
from jax.experimental.pallas import tpu as pltpu


# ----------------------------------------------------------------------------
# ConvTranspose2d(k=4, s=2, p=1) decomposition: output parity phase (py, px)
# at (2*jy+py, 2*jx+px) receives, for each tap (ky, kx) of matching parity,
#   d[:, :, jy+dy, jx+dx] @ W[:, :, ky, kx],  dy=(py+1-ky)/2, dx=(px+1-kx)/2.
# ----------------------------------------------------------------------------
_PHASES = ((0, 0), (0, 1), (1, 0), (1, 1))


def _phase_taps():
    taps = []
    for py, px in _PHASES:
        lst = []
        for ky in range(4):
            if (ky % 2) != ((py + 1) % 2):
                continue
            dy = (py + 1 - ky) // 2
            for kx in range(4):
                if (kx % 2) != ((px + 1) % 2):
                    continue
                dx = (px + 1 - kx) // 2
                lst.append((dy, dx, ky, kx))
        taps.append(tuple(lst))
    return tuple(taps)


_PHASE_TAPS = _phase_taps()                                   # 4 phases x 4 taps
_SHIFTS = tuple(sorted({(dy, dx) for taps in _PHASE_TAPS
                        for (dy, dx, _, _) in taps}))         # 9 distinct shifts

# k=4/s=2/p=1 => |dy|,|dx| <= 1; this is what guarantees that the lane-roll
# wraparound only ever lands on columns the validity mask zeroes out (no
# cross-batch leakage).  Static assert per review.
assert all(abs(dy) <= 1 and abs(dx) <= 1 for dy, dx in _SHIFTS)


# ------------------------- roll-direction self check ------------------------ #

def _roll_probe_kernel(x_ref, o_ref):
    o_ref[...] = pltpu.roll(x_ref[...], shift=1, axis=1)


def probe_roll_sign():
    """+1 if pltpu.roll matches np.roll (result[i] = x[i - shift]), else -1.

    One 1-vreg kernel run once at startup; keeps the fused kernel correct even
    if the rotate direction differs across Pallas/Mosaic versions.
    """
    x = jnp.tile(jnp.arange(128, dtype=jnp.int32)[None, :], (8, 1))
    y = pl.pallas_call(
        _roll_probe_kernel,
        out_shape=jax.ShapeDtypeStruct((8, 128), jnp.int32),
    )(x)
    return 1 if int(y[0, 1]) == 0 else -1


# -------------------- one-time (per model) weight precompute ---------------- #

def precompute_params(w_down, w_up, gamma, beta):
    """Hoisted weight preprocessing -- run once, NOT per forward call."""
    inner, cin = int(w_down.shape[0]), int(w_down.shape[1])
    outer = int(w_up.shape[1])
    ns = len(_SHIFTS)

    # Conv2d weight (inner, Cin, 4, 4) -> (inner, 16*Cin); K order = (ky, kx, c).
    w1t = jnp.asarray(
        np.transpose(np.asarray(w_down, np.float32), (0, 2, 3, 1))
        .reshape(inner, 16 * cin),
        dtype=jnp.bfloat16)

    # ConvTranspose weight: 4 output-parity phases stacked along M, the 9
    # distinct spatial shifts of d stacked along K -> the whole up-conv is ONE
    # MXU matmul inside the kernel.
    w_up_np = np.asarray(w_up, np.float32)
    wbig = np.zeros((4 * outer, ns * inner), np.float32)
    for ph, taps in enumerate(_PHASE_TAPS):
        for dy, dx, ky, kx in taps:
            s = _SHIFTS.index((dy, dx))
            wbig[ph * outer:(ph + 1) * outer,
                 s * inner:(s + 1) * inner] = w_up_np[:, :, ky, kx].T
    wbig = jnp.asarray(wbig, dtype=jnp.bfloat16)

    # (4*outer, 4*outer) 0/1 matrix summing the 4 phase row-blocks per channel
    # (BatchNorm batch statistics); size independent of H, W.
    psum = np.zeros((4 * outer, 4 * outer), np.float32)
    for r in range(4 * outer):
        for c in range(4 * outer):
            if r % outer == c % outer:
                psum[r, c] = 1.0
    psum = jnp.asarray(psum)

    g4 = jnp.asarray(np.tile(np.asarray(gamma, np.float32), 4)
                     .reshape(4 * outer, 1))
    b4 = jnp.asarray(np.tile(np.asarray(beta, np.float32), 4)
                     .reshape(4 * outer, 1))
    return w1t, wbig, psum, g4, b4


# --------------------------------- forward ---------------------------------- #

@functools.partial(jax.jit, static_argnames=("roll_sign",))
def unet_innermost_forward(x_nchw, w1t, wbig, psum, g4, b4, *, roll_sign=1):
    """x: (N, Cin, H, W) -> (N, Cin + outer_nc, H, W), NCHW like PyTorch."""
    n, cin, h, w = x_nchw.shape
    inner = w1t.shape[0]
    outer = g4.shape[0] // 4
    assert h % 2 == 0 and w % 2 == 0
    ho, wo = h // 2, w // 2
    assert ho >= 2 and wo >= 2
    hwq = ho * wo
    m1 = n * hwq                       # lane dim of everything inside the kernel
    ns = len(_SHIFTS)
    inv_cnt = 1.0 / float(n * h * w)   # BatchNorm count over (N, H, W)

    # -------- glue (small, XLA): LeakyReLU once on x + K-major im2col --------
    # TODO(synk): at production sizes fold this im2col into the kernel with
    # strided in-kernel reads so the patch slab never round-trips through HBM.
    lx = jnp.where(x_nchw >= 0, x_nchw, 0.2 * x_nchw)
    xp = jnp.pad(lx, ((0, 0), (0, 0), (1, 1), (1, 1)))
    rows = []
    for ky in range(4):
        for kx in range(4):
            sl = xp[:, :, ky:ky + 2 * ho:2, kx:kx + 2 * wo:2]   # (n, cin, ho, wo)
            rows.append(jnp.transpose(sl, (1, 0, 2, 3)).reshape(cin, m1))
    p1t = jnp.concatenate(rows, axis=0).astype(jnp.bfloat16)    # (16*cin, m1)

    # ------------------------------ fused kernel -----------------------------
    def kernel(p1t_ref, w1t_ref, wbig_ref, psum_ref, g_ref, b_ref, o_ref):
        # down path: Conv2d(k4,s2,p1) as one MXU matmul, then ReLU.
        d_t = jnp.maximum(
            jnp.dot(w1t_ref[...], p1t_ref[...],
                    preferred_element_type=jnp.float32),
            0.0)                                        # (inner, m1) f32

        lane = jax.lax.broadcasted_iota(jnp.int32, d_t.shape, 1)
        jx = lane % wo
        jy = (lane // wo) % ho

        def shifted(dy, dx):
            # column m holds d_t[:, m + dy*wo + dx] (zero where (jy+dy, jx+dx)
            # leaves the Ho x Wo grid); wraparound only hits masked columns.
            off = dy * wo + dx
            if off == 0:
                return d_t
            rolled = pltpu.roll(d_t, shift=(roll_sign * -off) % m1, axis=1)
            valid = ((jx + dx >= 0) & (jx + dx < wo) &
                     (jy + dy >= 0) & (jy + dy < ho))
            return jnp.where(valid, rolled, 0.0)

        # up path: ConvTranspose2d(k4,s2,p1) as ONE MXU matmul -- 9 distinct
        # d-shifts stacked along K, 4 output-parity phases stacked along M.
        d_stack = jnp.concatenate([shifted(dy, dx) for dy, dx in _SHIFTS],
                                  axis=0).astype(jnp.bfloat16)   # (9*inner, m1)
        u_all = jnp.dot(wbig_ref[...], d_stack,
                        preferred_element_type=jnp.float32)      # (4*outer, m1)

        # train-mode BatchNorm2d: single-pass sum / sum-of-squares statistics
        # over (N, H, W) = the 4 phase row-blocks x all lanes, f32 throughout.
        ch_sum = jnp.sum(jnp.dot(psum_ref[...], u_all,
                                 preferred_element_type=jnp.float32),
                         axis=1, keepdims=True)                  # (4*outer, 1)
        ch_sq = jnp.sum(jnp.dot(psum_ref[...], u_all * u_all,
                                preferred_element_type=jnp.float32),
                        axis=1, keepdims=True)
        mean = ch_sum * inv_cnt
        var = jnp.maximum(ch_sq * inv_cnt - mean * mean, 0.0)
        scale = g_ref[...] * jax.lax.rsqrt(var + 1e-5)
        shift = b_ref[...] - mean * scale
        # one dense, sublane-aligned, lane-dense (4*outer x m1) store.
        o_ref[...] = u_all * scale + shift

    # TODO(synk): grid=(1,) keeps this on a single TensorCore; at real UNet
    # sizes split m1 (or batch) over a 'parallel' grid axis with a two-pass
    # BatchNorm (per-step sum/sumsq scratch) so v7x's second core is used, and
    # single-buffer the load-once operands under its 64 MiB VMEM.
    u_slab = pl.pallas_call(
        kernel,
        out_shape=jax.ShapeDtypeStruct((4 * outer, m1), jnp.float32),
        grid=(1,),
        in_specs=[
            pl.BlockSpec((16 * cin, m1), lambda i: (0, 0)),
            pl.BlockSpec((inner, 16 * cin), lambda i: (0, 0)),
            pl.BlockSpec((4 * outer, ns * inner), lambda i: (0, 0)),
            pl.BlockSpec((4 * outer, 4 * outer), lambda i: (0, 0)),
            pl.BlockSpec((4 * outer, 1), lambda i: (0, 0)),
            pl.BlockSpec((4 * outer, 1), lambda i: (0, 0)),
        ],
        out_specs=pl.BlockSpec((4 * outer, m1), lambda i: (0, 0)),
        compiler_params=pltpu.CompilerParams(
            dimension_semantics=("arbitrary",)),
    )(p1t, w1t, wbig, psum, g4, b4)

    # phase-major slab -> NCHW de-interleave (reshape/transpose in XLA) and the
    # skip concat; x never streams through the kernel.
    u6 = u_slab.reshape(2, 2, outer, n, ho, wo)        # (py, px, co, b, jy, jx)
    un = jnp.transpose(u6, (3, 2, 4, 0, 5, 1)).reshape(n, outer, h, w)
    return jnp.concatenate([x_nchw, un], axis=1)


# --------------------------- pure-JAX reference ----------------------------- #

def reference(x_nchw, w_down, w_up, gamma, beta):
    h = jnp.where(x_nchw >= 0, x_nchw, 0.2 * x_nchw)
    d = jax.lax.conv_general_dilated(
        h, w_down, window_strides=(2, 2), padding=((1, 1), (1, 1)),
        dimension_numbers=("NCHW", "OIHW", "NCHW"))
    d = jnp.maximum(d, 0.0)
    w_up_conv = jnp.transpose(jnp.flip(w_up, (2, 3)), (1, 0, 2, 3))
    u = jax.lax.conv_general_dilated(
        d, w_up_conv, window_strides=(1, 1), padding=((2, 2), (2, 2)),
        lhs_dilation=(2, 2), dimension_numbers=("NCHW", "OIHW", "NCHW"))
    mean = u.mean(axis=(0, 2, 3), keepdims=True)
    var = ((u - mean) ** 2).mean(axis=(0, 2, 3), keepdims=True)
    un = (u - mean) * jax.lax.rsqrt(var + 1e-5) * gamma.reshape(1, -1, 1, 1) \
         + beta.reshape(1, -1, 1, 1)
    return jnp.concatenate([x_nchw, un], axis=1)


# ----------------------------------- main ----------------------------------- #

if __name__ == "__main__":
    N, H, W = 2, 16, 16
    outer_nc = 4            # == input_nc (default when input_nc is None)
    inner_nc = 8

    key = jax.random.PRNGKey(0)
    kx, k1, k2, kg, kb = jax.random.split(key, 5)

    x = jax.random.normal(kx, (N, outer_nc, H, W), jnp.float32)
    # Conv2d(input_nc -> inner_nc, k=4), ConvTranspose2d(inner_nc -> outer_nc, k=4); bias=False.
    w_down = 0.05 * jax.random.normal(k1, (inner_nc, outer_nc, 4, 4), jnp.float32)
    w_up = 0.05 * jax.random.normal(k2, (inner_nc, outer_nc, 4, 4), jnp.float32)
    # BatchNorm2d(outer_nc) affine parameters.
    gamma = 1.0 + 0.1 * jax.random.normal(kg, (outer_nc,), jnp.float32)
    beta = 0.1 * jax.random.normal(kb, (outer_nc,), jnp.float32)

    roll_sign = probe_roll_sign()                     # one-time direction probe
    params = precompute_params(w_down, w_up, gamma, beta)   # hoisted, once

    out = unet_innermost_forward(x, *params, roll_sign=roll_sign)
    out = jax.block_until_ready(out)

    assert out.shape == (N, 2 * outer_nc, H, W), out.shape

    ref = reference(x, w_down, w_up, gamma, beta)
    np.testing.assert_allclose(np.asarray(out), np.asarray(ref), rtol=2e-2, atol=2e-2)

    print("KERNEL_OK")
</pallas_src>

<mosaic_0001>
module attributes {stable_mosaic.version = 11 : i64} {
  func.func @_roll_probe_kernel(%arg0: memref<8x128xi32, #tpu.memory_space<vmem>>, %arg1: memref<8x128xi32, #tpu.memory_space<vmem>>) attributes {dimension_semantics = [], scalar_prefetch = 0 : i64, scratch_operands = 0 : i64, tpu.core_type = #tpu.core_type<tc>} {
    %c0 = arith.constant 0 : index
    %c0_0 = arith.constant 0 : index
    %0 = vector.load %arg0[%c0, %c0_0] : memref<8x128xi32, #tpu.memory_space<vmem>>, vector<8x128xi32>
    %c1_i32 = arith.constant 1 : i32
    %1 = tpu.dynamic_rotate %0 by %c1_i32 dim 1 : vector<8x128xi32>, i32 -> vector<8x128xi32>
    %c0_1 = arith.constant 0 : index
    %c0_2 = arith.constant 0 : index
    %2 = vector.load %arg1[%c0_1, %c0_2] : memref<8x128xi32, #tpu.memory_space<vmem>>, vector<8x128xi32>
    tpu.vector_store %arg1[%c0_1, %c0_2], %1 {strides = array<i32>} : memref<8x128xi32, #tpu.memory_space<vmem>>, vector<8x128xi32>,
    return
  }
}

</mosaic_0001>

<llo_original>
// kernel: tpu_custom_call.1
$region0: #{tpu_custom_call.1}
  #allocation0 [shape = 'u32[]', space=smem, size = 0x4, offset = 0x4, fixed_abs, tag = 'smem constant byte address 0x4 - core index']
  #allocation1 [shape = 'u32[72,128]{1,0:T(1,128)}', space=vmem, size = 0x9000, scoped, tag = 'internal scratch']
  %s0 = inlined_call_operand.hbm [shape: s32[8,128], index: 0, kind: input, shape index: {}]
  %s1 = inlined_call_operand.hbm [shape: s32[8,128], index: 1, kind: output, shape index: {}]
  %s2 = sld [smem:[#allocation0]]
  $region18: #{tpu_custom_call.1} parent=0
    _
  %s4 = ssub.s32 1, %s2
  %s5 = scalar_select 0, %s4, %s2
  $region1: #{tpu_custom_call.1} parent=0
    #allocation2 [shape = 'u8[4096]{0}', space=vmem, size = 0x1000, scoped, tag = 'input window, operand 0, single buffered']
    #allocation3 [shape = 's32[1]{0}', space=sflag, size = 0x4, scoped, tag = 'scoped memory for tpu_custom_call.1']
    #allocation4 [shape = 's32[1]{0}', space=sflag, size = 0x4, scoped, tag = 'scoped memory for tpu_custom_call.1']
    #allocation5 [shape = 'u8[4096]{0}', space=vmem, size = 0x1000, scoped, tag = 'output window, operand 0, single buffered']
    %6 = vsyncpa [#allocation3], 0
    %7 = vsyncpa [#allocation4], 0
    // Predicated region
    $region2: #{tpu_custom_call.1} parent=1 // pred_check
      _
    $region3: #{tpu_custom_call.1} parent=1 // pred_check_branch
      %9 = sbr.rel (0) target = $region5
    $region4: #{tpu_custom_call.1} parent=1 // pred_region
      %11 = vsyncadd [#allocation3], 0
      %s13 = sshll.u32 %s0, 4
      %s14 = int_to_ptr.hbm [resolvable:$true] %s13
      %s15 = sshll.u32 [#allocation2], 4
      %s16 = int_to_ptr.vmem [resolvable:$true] %s15
      %18 = dma.hbm_to_vmem [thread:$0]  %s14, 128, %s16, [#allocation3]
    $region5: #{tpu_custom_call.1} parent=1 // pred_fallthru
      _
    // Predicated region
    $region6: #{tpu_custom_call.1} parent=1 // pred_check
      _
    $region7: #{tpu_custom_call.1} parent=1 // pred_check_branch
      %20 = sbr.rel (0) target = $region9
    $region8: #{tpu_custom_call.1} parent=1 // pred_region
      %22 = dma.done [#allocation3], 128
    $region9: #{tpu_custom_call.1} parent=1 // pred_fallthru
      _
    %v23 = vld [vmem:[#allocation2] sm:$0xff]
    %24 = vrot.lane.b32.xlu0 %v23, 1
    %v25 = vpop.permute.xlu0 %24
    %26 = vst [vmem:[#allocation5] sm:$0xff] %v25
    // Predicated region
    $region10: #{tpu_custom_call.1} parent=1 // pred_check
      _
    $region11: #{tpu_custom_call.1} parent=1 // pred_check_branch
      %28 = sbr.rel (0) target = $region13
    $region12: #{tpu_custom_call.1} parent=1 // pred_region
      %30 = vsyncadd [#allocation4], 0
      %s32 = sshll.u32 [#allocation5], 4
      %s33 = int_to_ptr.vmem [resolvable:$true] %s32
      %s34 = sshll.u32 %s1, 4
      %s35 = int_to_ptr.hbm [resolvable:$true] %s34
      %37 = dma.vmem_to_hbm [thread:$0]  %s33, 128, %s35, [#allocation4]
    $region13: #{tpu_custom_call.1} parent=1 // pred_fallthru
      _
    // Predicated region
    $region14: #{tpu_custom_call.1} parent=1 // pred_check
      _
    $region15: #{tpu_custom_call.1} parent=1 // pred_check_branch
      %39 = sbr.rel (0) target = $region17
    $region16: #{tpu_custom_call.1} parent=1 // pred_region
      %41 = dma.done [#allocation4], 128
    $region17: #{tpu_custom_call.1} parent=1 // pred_fallthru
      _
    %42 = vsyncpa [#allocation3], 1
    %43 = vsyncpa [#allocation4], 1

</llo_original>
